<compile_context>
chip_gen: v6e
topology: v6e:2x2x1
jax: 0.10.0
libtpu: 0.0.40
codegen_flags: <defaults>
</compile_context>

<pallas_src>
import functools
from enum import Enum

import jax
import jax.numpy as jnp
from jax.experimental import pallas as pl
from jax.experimental.pallas import tpu as pltpu


class NonLinearType(Enum):
    RELU = 0
    RELU6 = 1
    IDENTITY = 2
    SIGMOID = 3
    SWISH = 4
    HSWISH = 5


def _apply_nl(x, nl_type: NonLinearType):
    """The non-linearity itself (used by the kernel and the small-tensor bypass)."""
    if nl_type == NonLinearType.RELU:
        return jnp.maximum(x, 0.0)
    if nl_type == NonLinearType.RELU6:
        return jnp.minimum(jnp.maximum(x, 0.0), 6.0)
    if nl_type == NonLinearType.IDENTITY:
        return x
    if nl_type == NonLinearType.SIGMOID:
        return jax.nn.sigmoid(x)
    if nl_type == NonLinearType.SWISH:
        # MemoryEfficientSwish forward: x * sigmoid(x)
        return x * jax.nn.sigmoid(x)
    if nl_type == NonLinearType.HSWISH:
        # HSwish: x * relu6(x + 3) / 6
        return x * jnp.minimum(jnp.maximum(x + 3.0, 0.0), 6.0) * (1.0 / 6.0)
    raise ValueError(f"unknown nl_type {nl_type}")


def _nl_kernel(x_ref, o_ref, *, nl_type: NonLinearType):
    o_ref[...] = _apply_nl(x_ref[...], nl_type).astype(o_ref.dtype)


def _round_up(a: int, b: int) -> int:
    return ((a + b - 1) // b) * b


def _cdiv(a: int, b: int) -> int:
    return (a + b - 1) // b


# itemsize (bytes) -> packed sublane count for a full vreg tile
_SUBLANE_PACK = {4: 8, 2: 16, 1: 32}

_LANE_SLAB = 1024                 # lane-dense slab width (large multiple of 128)
_TARGET_BLOCK_BYTES = 2 << 20     # ~2 MiB per block; 4x fits every gen's scoped VMEM
_SMALL_BYPASS_ELEMS = 1 << 15     # below this, XLA's fused elementwise is already optimal


def non_linear_forward(x,
                       nl_type: NonLinearType = NonLinearType.RELU,
                       is_float_activation: bool = True,
                       force_pallas: bool = False):
    """Pallas implementation of NonLinear.forward (float-activation path).

    x: NCHW tensor (any rank works — op is elementwise).
    """
    if not is_float_activation:
        # TODO(synk): HMQ Quantization source not provided; only float path exists.
        raise NotImplementedError("Quantized activation path (HMQ) is not available.")

    orig_shape = x.shape
    n = int(x.size)
    if n == 0:
        return x

    # Small-tensor bypass: kernel launch/pipeline overhead dwarfs the work.
    if n < _SMALL_BYPASS_ELEMS and not force_pallas:
        return _apply_nl(x, nl_type)

    itemsize = jnp.dtype(x.dtype).itemsize
    sub = _SUBLANE_PACK.get(itemsize, 8)
    lane = _LANE_SLAB

    # Rows of the (rows, lane) slab we need to cover the data.
    rows_needed = _cdiv(n, lane)

    # Block rows from the VMEM budget, dtype-aware sublane granularity.
    budget_rows = max(sub, (_TARGET_BLOCK_BYTES // (lane * itemsize)) // sub * sub)
    row_tile = min(budget_rows, _round_up(rows_needed, sub))

    grid = _cdiv(rows_needed, row_tile)
    if grid == 1 and row_tile >= 2 * sub:
        # Give v7x's two TensorCores at least one block each.
        row_tile = _round_up(_cdiv(rows_needed, 2), sub)
        grid = _cdiv(rows_needed, row_tile)

    padded_rows = grid * row_tile
    padded = padded_rows * lane

    flat = x.reshape(-1)
    if padded != n:                       # conditional: no copy when already aligned
        flat = jnp.pad(flat, (0, padded - n))
    x2d = flat.reshape(padded_rows, lane)

    kernel = functools.partial(_nl_kernel, nl_type=nl_type)
    out2d = pl.pallas_call(
        kernel,
        out_shape=jax.ShapeDtypeStruct((padded_rows, lane), x2d.dtype),
        grid_spec=pltpu.PrefetchScalarGridSpec(
            num_scalar_prefetch=0,
            grid=(grid,),
            in_specs=[pl.BlockSpec((row_tile, lane), lambda i: (i, 0))],
            out_specs=pl.BlockSpec((row_tile, lane), lambda i: (i, 0)),
        ),
        compiler_params=pltpu.CompilerParams(
            dimension_semantics=("parallel",)),
    )(x2d)

    out_flat = out2d.reshape(-1)
    if padded != n:                       # conditional: slice only if we padded
        out_flat = out_flat[:n]
    return out_flat.reshape(orig_shape)


def _reference(x, nl_type):
    if nl_type == NonLinearType.RELU:
        return jnp.maximum(x, 0.0)
    if nl_type == NonLinearType.RELU6:
        return jnp.clip(x, 0.0, 6.0)
    if nl_type == NonLinearType.IDENTITY:
        return x
    if nl_type == NonLinearType.SIGMOID:
        return jax.nn.sigmoid(x)
    if nl_type == NonLinearType.SWISH:
        return x * jax.nn.sigmoid(x)
    if nl_type == NonLinearType.HSWISH:
        return x * jnp.clip(x + 3.0, 0.0, 6.0) / 6.0
    raise ValueError


if __name__ == "__main__":
    key = jax.random.PRNGKey(0)
    # NCHW input, consistent with out_channels=4
    x = jax.random.normal(key, (2, 4, 16, 16), dtype=jnp.float32) * 3.0

    ok = True
    for nlt in NonLinearType:
        # force_pallas=True so the Pallas kernel actually runs at this small size
        y = non_linear_forward(x, nl_type=nlt, force_pallas=True)
        y = jax.block_until_ready(y)
        ref = _reference(x, nlt)
        if y.shape != x.shape or y.dtype != x.dtype or not jnp.allclose(
                y, ref, atol=1e-5, rtol=1e-5):
            ok = False
            print(f"MISMATCH for {nlt}")
    if ok:
        print("KERNEL_OK")
</pallas_src>

<mosaic_0001>
module attributes {stable_mosaic.version = 11 : i64} {
  func.func @_nl_kernel(%arg0: i32, %arg1: memref<8x1024xf32, #tpu.memory_space<vmem>>, %arg2: memref<8x1024xf32, #tpu.memory_space<vmem>>) attributes {dimension_semantics = [#tpu.dimension_semantics<parallel>], iteration_bounds = array<i64: 1>, scalar_prefetch = 0 : i64, scratch_operands = 0 : i64, tpu.core_type = #tpu.core_type<tc>, window_params = [{transform_indices = @transform_0, window_bounds = array<i64: 8, 1024>}, {transform_indices = @transform_1, window_bounds = array<i64: 8, 1024>}]} {
    %c0 = arith.constant 0 : index
    %c0_0 = arith.constant 0 : index
    %0 = vector.load %arg1[%c0, %c0_0] : memref<8x1024xf32, #tpu.memory_space<vmem>>, vector<8x1024xf32>
    %cst = arith.constant 0.000000e+00 : f32
    %1 = vector.broadcast %cst : f32 to vector<8x1024xf32>
    %2 = arith.maximumf %0, %1 : vector<8x1024xf32>
    %c0_1 = arith.constant 0 : index
    %c0_2 = arith.constant 0 : index
    %3 = vector.load %arg2[%c0_1, %c0_2] : memref<8x1024xf32, #tpu.memory_space<vmem>>, vector<8x1024xf32>
    tpu.vector_store %arg2[%c0_1, %c0_2], %2 {strides = array<i32>} : memref<8x1024xf32, #tpu.memory_space<vmem>>, vector<8x1024xf32>,
    return
  }
  func.func @transform_0(%arg0: i32) -> (i32, i32) {
    %c0_i32 = arith.constant 0 : i32
    %c0_i32_0 = arith.constant 0 : i32
    return %arg0, %c0_i32 : i32, i32
  }
  func.func @transform_1(%arg0: i32) -> (i32, i32) {
    %c0_i32 = arith.constant 0 : i32
    %c0_i32_0 = arith.constant 0 : i32
    return %arg0, %c0_i32 : i32, i32
  }
}

</mosaic_0001>

<llo_original>
// kernel: tpu_custom_call.1
$region0: #{tpu_custom_call.1}
  #allocation0 [shape = 'u32[]', space=smem, size = 0x4, offset = 0x4, fixed_abs, tag = 'smem constant byte address 0x4 - core index']
  #allocation1 [shape = 'u32[144,128]{1,0:T(1,128)}', space=vmem, size = 0x12000, scoped, tag = 'internal scratch']
  %s0 = inlined_call_operand.hbm [shape: f32[8,1024], index: 0, kind: input, shape index: {}]
  %s1 = inlined_call_operand.hbm [shape: f32[8,1024], index: 1, kind: output, shape index: {}]
  %s2 = sld [smem:[#allocation0]]
  $region18: #{tpu_custom_call.1} parent=0
    _
  %s4 = ssub.s32 1, %s2
  %s5 = scalar_select 0, %s4, %s2
  $region1: #{tpu_custom_call.1} parent=0
    #allocation2 [shape = 'u8[32768]{0}', space=vmem, size = 0x8000, scoped, tag = 'input window, operand 0, single buffered']
    #allocation3 [shape = 's32[1]{0}', space=sflag, size = 0x4, scoped, tag = 'scoped memory for tpu_custom_call.1']
    #allocation4 [shape = 's32[1]{0}', space=sflag, size = 0x4, scoped, tag = 'scoped memory for tpu_custom_call.1']
    #allocation5 [shape = 'u8[32768]{0}', space=vmem, size = 0x8000, scoped, tag = 'output window, operand 0, single buffered']
    %6 = vsyncpa [#allocation3], 0
    %7 = vsyncpa [#allocation4], 0
    // Predicated region
    $region2: #{tpu_custom_call.1} parent=1 // pred_check
      _
    $region3: #{tpu_custom_call.1} parent=1 // pred_check_branch
      %9 = sbr.rel (0) target = $region5
    $region4: #{tpu_custom_call.1} parent=1 // pred_region
      %s11 = ssub.s32 1024, 1024
      %12 = vsyncadd [#allocation3], %s11
      %s14 = sshll.u32 [#allocation2], 4
      %s15 = int_to_ptr.vmem [resolvable:$true] %s14
      %17 = dma.hbm_to_vmem [thread:$0]  %s0, 1024, %s15, [#allocation3]
    $region5: #{tpu_custom_call.1} parent=1 // pred_fallthru
      _
    // Predicated region
    $region6: #{tpu_custom_call.1} parent=1 // pred_check
      _
    $region7: #{tpu_custom_call.1} parent=1 // pred_check_branch
      %19 = sbr.rel (0) target = $region9
    $region8: #{tpu_custom_call.1} parent=1 // pred_region
      %20 = dma.done [#allocation3], 1024
    $region9: #{tpu_custom_call.1} parent=1 // pred_fallthru
      _
    %v21 = vld [vmem:[#allocation2] sm:$0xff]
    %v22 = vld [vmem:[#allocation2 + $0x8] sm:$0xff]
    %v23 = vld [vmem:[#allocation2 + $0x10] sm:$0xff]
    %v24 = vld [vmem:[#allocation2 + $0x18] sm:$0xff]
    %v25 = vld [vmem:[#allocation2 + $0x20] sm:$0xff]
    %v26 = vld [vmem:[#allocation2 + $0x28] sm:$0xff]
    %v27 = vld [vmem:[#allocation2 + $0x30] sm:$0xff]
    %v28 = vld [vmem:[#allocation2 + $0x38] sm:$0xff]
    %v29 = vmax.f32 %v21, 0.0
    %v30 = vmax.f32 %v22, 0.0
    %v31 = vmax.f32 %v23, 0.0
    %v32 = vmax.f32 %v24, 0.0
    %v33 = vmax.f32 %v25, 0.0
    %v34 = vmax.f32 %v26, 0.0
    %v35 = vmax.f32 %v27, 0.0
    %v36 = vmax.f32 %v28, 0.0
    %37 = vst [vmem:[#allocation5] sm:$0xff] %v29
    %38 = vst [vmem:[#allocation5 + $0x8] sm:$0xff] %v30
    %39 = vst [vmem:[#allocation5 + $0x10] sm:$0xff] %v31
    %40 = vst [vmem:[#allocation5 + $0x18] sm:$0xff] %v32
    %41 = vst [vmem:[#allocation5 + $0x20] sm:$0xff] %v33
    %42 = vst [vmem:[#allocation5 + $0x28] sm:$0xff] %v34
    %43 = vst [vmem:[#allocation5 + $0x30] sm:$0xff] %v35
    %44 = vst [vmem:[#allocation5 + $0x38] sm:$0xff] %v36
    // Predicated region
    $region10: #{tpu_custom_call.1} parent=1 // pred_check
      _
    $region11: #{tpu_custom_call.1} parent=1 // pred_check_branch
      %46 = sbr.rel (0) target = $region13
    $region12: #{tpu_custom_call.1} parent=1 // pred_region
      %s48 = ssub.s32 1024, 1024
      %49 = vsyncadd [#allocation4], %s48
      %s51 = sshll.u32 [#allocation5], 4
      %s52 = int_to_ptr.vmem [resolvable:$true] %s51
      %54 = dma.vmem_to_hbm [thread:$0]  %s52, 1024, %s1, [#allocation4]
    $region13: #{tpu_custom_call.1} parent=1 // pred_fallthru
      _
    // Predicated region
    $region14: #{tpu_custom_call.1} parent=1 // pred_check
      _
    $region15: #{tpu_custom_call.1} parent=1 // pred_check_branch
      %56 = sbr.rel (0) target = $region17
    $region16: #{tpu_custom_call.1} parent=1 // pred_region
      %57 = dma.done [#allocation4], 1024
    $region17: #{tpu_custom_call.1} parent=1 // pred_fallthru
      _
    %58 = vsyncpa [#allocation3], 1
    %59 = vsyncpa [#allocation4], 1

</llo_original>
